<compile_context>
chip_gen: v7x
topology: tpu7x:2x2x1
jax: 0.10.0
libtpu: 0.0.40
codegen_flags: <defaults>
</compile_context>

<pallas_src>
import functools

import jax
import jax.numpy as jnp
import numpy as np
from jax import lax
from jax.experimental import pallas as pl
from jax.experimental.pallas import tpu as pltpu


def _confusion_matrix_kernel(x_ref, y_ref, o_ref, cm_acc, row_acc, *,
                             eps, inv_b, n_total, tile_n, has_partial):
    # x_ref, y_ref: (1, C, TN) VMEM blocks of the current batch / spatial tile
    # o_ref:        (1, C, C) per-shard output block, resident across (b, t)
    # cm_acc:       (C, C) f32 scratch   (un-normalized y @ h^T for this batch)
    # row_acc:      (C, 1) f32 scratch   (per-class row sums for this batch)
    b = pl.program_id(1)          # batch index within this shard
    t = pl.program_id(2)          # spatial (N) tile index
    nt = pl.num_programs(2)

    # Zero this shard's output block once, on its very first grid step.
    @pl.when((b == 0) & (t == 0))
    def _():
        o_ref[...] = jnp.zeros_like(o_ref)

    # Reset per-batch accumulators at the first N-tile of every batch element.
    @pl.when(t == 0)
    def _():
        cm_acc[...] = jnp.zeros_like(cm_acc)
        row_acc[...] = jnp.zeros_like(row_acc)

    x = x_ref[0]                                   # (C, TN) logits, native dtype
    y = y_ref[0]                                   # (C, TN) targets, native dtype
    C = x.shape[0]

    # argmax over channels (first-occurrence tie-break, matching torch.argmax),
    # expressed directly as a one-hot without 1-D intermediates.
    xf = x.astype(jnp.float32)
    cls_idx = lax.broadcasted_iota(jnp.int32, (C, tile_n), 0)
    xmax = jnp.max(xf, axis=0, keepdims=True)                            # (1, TN)
    is_max = xf == xmax                                                  # (C, TN)
    argm = jnp.min(jnp.where(is_max, cls_idx, C), axis=0, keepdims=True)
    pred_hit = cls_idx == argm                                           # (C, TN)

    if has_partial:
        # Lane-validity mask for the padded lanes of a partial last tile.
        valid = n_total - t * tile_n               # may exceed tile_n; that's fine
        lane_idx = lax.broadcasted_iota(jnp.int32, (C, tile_n), 1)
        lane_ok = lane_idx < valid                                       # (C, TN)
        h = jnp.where(pred_hit & lane_ok, 1.0, 0.0).astype(jnp.float32)
        yf = jnp.where(lane_ok, y.astype(jnp.float32), 0.0)              # (C, TN)
    else:
        h = jnp.where(pred_hit, 1.0, 0.0).astype(jnp.float32)
        yf = y.astype(jnp.float32)

    # Accumulate the un-normalized confusion matrix and the per-class row sums.
    cm_acc[...] += lax.dot_general(
        yf, h, (((1,), (1,)), ((), ())), preferred_element_type=jnp.float32)
    row_acc[...] += jnp.sum(yf, axis=1, keepdims=True)

    # Finalize once per batch element: single multiply, scaled by 1/B so the
    # sum over batch elements (and shards) yields the batch mean.
    @pl.when(t == nt - 1)
    def _():
        inv = pl.reciprocal(row_acc[...] + eps) * inv_b                  # (C, 1)
        o_ref[0] += cm_acc[...] * inv


def confusion_matrix(input_nchw, target_nchw, eps=1e-8, *,
                     vmem_input_budget_bytes=8 * 1024 * 1024):
    """JAX wrapper: flattens NCHW -> (B, C, N) and runs the Pallas kernel."""
    B, C, H, W = input_nchw.shape
    N = H * W
    # Keep native dtypes -- no f32 upcast in the wrapper (HBM bytes matter).
    x = input_nchw.reshape(B, C, N)
    y = target_nchw.reshape(B, C, N)

    # Spatial tile: largest multiple of 128 whose double-buffered x+y blocks
    # fit the VMEM input budget (conservative for v5e's 16 MiB scoped default
    # and v7x's 64 MiB physical VMEM). Small images use a single full-N block.
    bytes_per_lane = C * (x.dtype.itemsize + y.dtype.itemsize)
    tn_cap = max(128, (vmem_input_budget_bytes // (2 * bytes_per_lane)) // 128 * 128)
    tile_n = N if N <= tn_cap else tn_cap
    num_tiles = pl.cdiv(N, tile_n)
    has_partial = (N % tile_n) != 0

    # Split the batch across two shards when possible: the leading "parallel"
    # axis lets a megacore chip's TensorCores each take half the batch; on
    # single-core chips it is just a serial outer loop.
    shards = 2 if (B >= 2 and B % 2 == 0) else 1
    bps = B // shards

    kernel = functools.partial(
        _confusion_matrix_kernel,
        eps=float(eps), inv_b=1.0 / float(B), n_total=N, tile_n=tile_n,
        has_partial=has_partial)

    partial_cm = pl.pallas_call(
        kernel,
        out_shape=jax.ShapeDtypeStruct((shards, C, C), jnp.float32),
        grid_spec=pltpu.PrefetchScalarGridSpec(
            num_scalar_prefetch=0,
            grid=(shards, bps, num_tiles),
            in_specs=[
                pl.BlockSpec((1, C, tile_n), lambda s, b, t: (s * bps + b, 0, t)),
                pl.BlockSpec((1, C, tile_n), lambda s, b, t: (s * bps + b, 0, t)),
            ],
            out_specs=pl.BlockSpec((1, C, C), lambda s, b, t: (s, 0, 0)),
            scratch_shapes=[
                pltpu.VMEM((C, C), jnp.float32),   # un-normalized cm accumulator
                pltpu.VMEM((C, 1), jnp.float32),   # per-batch row sums
            ],
        ),
        compiler_params=pltpu.CompilerParams(
            dimension_semantics=("parallel", "arbitrary", "arbitrary"),
            vmem_limit_bytes=48 * 1024 * 1024,
        ),
    )(x, y)

    # Per-batch contributions are already scaled by 1/B, so summing the shard
    # partials yields the mean over the batch.
    return partial_cm.sum(axis=0)


if __name__ == "__main__":
    key = jax.random.PRNGKey(0)
    k1, k2 = jax.random.split(key)

    B, C, H, W = 2, 4, 16, 16
    # logits
    x = jax.random.normal(k1, (B, C, H, W), dtype=jnp.float32)
    # one-hot target along the channel dim (NCHW), like the PyTorch usage
    labels = jax.random.randint(k2, (B, H, W), 0, C)
    target = jax.nn.one_hot(labels, C, axis=1, dtype=jnp.float32)  # (B, C, H, W)

    cm = confusion_matrix(x, target)
    cm = jax.block_until_ready(cm)

    # Pure-JAX reference mirroring the PyTorch module (tolerance check).
    pred = jax.nn.one_hot(jnp.argmax(x, axis=1), C, axis=1, dtype=jnp.float32)
    yf = target.reshape(B, C, -1)
    hf = pred.reshape(B, C, -1)
    ref = jnp.einsum('bcn,bdn->bcd', yf, hf)
    ref = (ref / (yf.sum(-1, keepdims=True) + 1e-8)).mean(axis=0)

    if not np.allclose(np.asarray(cm), np.asarray(ref), rtol=1e-4, atol=1e-4):
        raise AssertionError("confusion matrix mismatch vs reference")

    print("KERNEL_OK")
</pallas_src>

<mosaic_0001>
module attributes {stable_mosaic.version = 11 : i64} {
  func.func @_confusion_matrix_kernel(%arg0: i32, %arg1: i32, %arg2: i32, %arg3: memref<1x4x256xf32, #tpu.memory_space<vmem>>, %arg4: memref<1x4x256xf32, #tpu.memory_space<vmem>>, %arg5: memref<1x4x4xf32, #tpu.memory_space<vmem>>, %arg6: memref<4x4xf32, #tpu.memory_space<vmem>>, %arg7: memref<4x1xf32, #tpu.memory_space<vmem>>) attributes {dimension_semantics = [#tpu.dimension_semantics<parallel>, #tpu.dimension_semantics<arbitrary>, #tpu.dimension_semantics<arbitrary>], iteration_bounds = array<i64: 2, 1, 1>, scalar_prefetch = 0 : i64, scratch_operands = 2 : i64, tpu.core_type = #tpu.core_type<tc>, window_params = [{transform_indices = @transform_0, window_bounds = array<i64: 1, 4, 256>}, {transform_indices = @transform_1, window_bounds = array<i64: 1, 4, 256>}, {transform_indices = @transform_2, window_bounds = array<i64: 1, 4, 4>}]} {
    %c0_i32 = arith.constant 0 : i32
    %0 = arith.cmpi eq, %arg1, %c0_i32 : i32
    %c0_i32_0 = arith.constant 0 : i32
    %1 = arith.cmpi eq, %arg2, %c0_i32_0 : i32
    %2 = arith.andi %0, %1 : i1
    %3 = arith.extui %2 : i1 to i32
    %c0_i32_1 = arith.constant 0 : i32
    %4 = arith.cmpi ne, %3, %c0_i32_1 : i32
    scf.if %4 {
      %cst_24 = arith.constant 0.000000e+00 : f32
      %38 = vector.broadcast %cst_24 : f32 to vector<1x4x4xf32>
      %c0_25 = arith.constant 0 : index
      %c0_26 = arith.constant 0 : index
      %c0_27 = arith.constant 0 : index
      %39 = vector.load %arg5[%c0_25, %c0_26, %c0_27] : memref<1x4x4xf32, #tpu.memory_space<vmem>>, vector<1x4x4xf32>
      tpu.vector_store %arg5[%c0_25, %c0_26, %c0_27], %38 {strides = array<i32>} : memref<1x4x4xf32, #tpu.memory_space<vmem>>, vector<1x4x4xf32>,
    } else {
    }
    %c0_i32_2 = arith.constant 0 : i32
    %5 = arith.cmpi eq, %arg2, %c0_i32_2 : i32
    %6 = arith.extui %5 : i1 to i32
    %c0_i32_3 = arith.constant 0 : i32
    %7 = arith.cmpi ne, %6, %c0_i32_3 : i32
    scf.if %7 {
      %cst_24 = arith.constant 0.000000e+00 : f32
      %38 = vector.broadcast %cst_24 : f32 to vector<4x4xf32>
      %c0_25 = arith.constant 0 : index
      %c0_26 = arith.constant 0 : index
      %39 = vector.load %arg6[%c0_25, %c0_26] : memref<4x4xf32, #tpu.memory_space<vmem>>, vector<4x4xf32>
      tpu.vector_store %arg6[%c0_25, %c0_26], %38 {strides = array<i32>} : memref<4x4xf32, #tpu.memory_space<vmem>>, vector<4x4xf32>,
      %cst_27 = arith.constant 0.000000e+00 : f32
      %40 = vector.broadcast %cst_27 : f32 to vector<4x1xf32>
      %c0_28 = arith.constant 0 : index
      %c0_29 = arith.constant 0 : index
      %41 = vector.load %arg7[%c0_28, %c0_29] : memref<4x1xf32, #tpu.memory_space<vmem>>, vector<4x1xf32>
      tpu.vector_store %arg7[%c0_28, %c0_29], %40 {strides = array<i32>} : memref<4x1xf32, #tpu.memory_space<vmem>>, vector<4x1xf32>,
    } else {
    }
    %c0 = arith.constant 0 : index
    %c0_4 = arith.constant 0 : index
    %c0_5 = arith.constant 0 : index
    %8 = vector.load %arg3[%c0, %c0_4, %c0_5] : memref<1x4x256xf32, #tpu.memory_space<vmem>>, vector<1x4x256xf32>
    %9 = vector.shape_cast %8 : vector<1x4x256xf32> to vector<4x256xf32>
    %c0_6 = arith.constant 0 : index
    %c0_7 = arith.constant 0 : index
    %c0_8 = arith.constant 0 : index
    %10 = vector.load %arg4[%c0_6, %c0_7, %c0_8] : memref<1x4x256xf32, #tpu.memory_space<vmem>>, vector<1x4x256xf32>
    %11 = vector.shape_cast %10 : vector<1x4x256xf32> to vector<4x256xf32>
    %12 = tpu.iota {dimensions = array<i32: 0>} : vector<4x256xi32>
    %cst = arith.constant dense<0xFF800000> : vector<256xf32>
    %13 = vector.multi_reduction <maximumf>, %9, %cst [0] : vector<4x256xf32> to vector<256xf32>
    %14 = vector.shape_cast %13 : vector<256xf32> to vector<1x256xf32>
    %15 = vector.broadcast %14 : vector<1x256xf32> to vector<4x256xf32>
    %16 = arith.cmpf oeq, %9, %15 : vector<4x256xf32>
    %c4_i32 = arith.constant 4 : i32
    %17 = vector.broadcast %c4_i32 : i32 to vector<4x256xi32>
    %18 = arith.select %16, %12, %17 : vector<4x256xi1>, vector<4x256xi32>
    %cst_9 = arith.constant dense<2147483647> : vector<256xi32>
    %19 = vector.multi_reduction <minsi>, %18, %cst_9 [0] : vector<4x256xi32> to vector<256xi32>
    %20 = vector.shape_cast %19 : vector<256xi32> to vector<1x256xi32>
    %21 = vector.broadcast %20 : vector<1x256xi32> to vector<4x256xi32>
    %22 = arith.cmpi eq, %12, %21 : vector<4x256xi32>
    %cst_10 = arith.constant 1.000000e+00 : f32
    %cst_11 = arith.constant 0.000000e+00 : f32
    %23 = vector.broadcast %cst_10 : f32 to vector<4x256xf32>
    %24 = vector.broadcast %cst_11 : f32 to vector<4x256xf32>
    %25 = arith.select %22, %23, %24 : vector<4x256xi1>, vector<4x256xf32>
    %c0_12 = arith.constant 0 : index
    %c0_13 = arith.constant 0 : index
    %26 = vector.load %arg6[%c0_12, %c0_13] : memref<4x4xf32, #tpu.memory_space<vmem>>, vector<4x4xf32>
    %cst_14 = arith.constant dense<0.000000e+00> : vector<4x4xf32>
    %27 = tpu.matmul %11, %25, %cst_14 {dimension_numbers = #tpu.dot_dimension_numbers<[1], [1], [0], [0], [0, 0, 1, 0], [], []>} : vector<4x256xf32>, vector<4x256xf32>, vector<4x4xf32> -> vector<4x4xf32>
    %28 = arith.addf %26, %27 : vector<4x4xf32>
    %c0_15 = arith.constant 0 : index
    %c0_16 = arith.constant 0 : index
    %29 = vector.load %arg6[%c0_15, %c0_16] : memref<4x4xf32, #tpu.memory_space<vmem>>, vector<4x4xf32>
    tpu.vector_store %arg6[%c0_15, %c0_16], %28 {strides = array<i32>} : memref<4x4xf32, #tpu.memory_space<vmem>>, vector<4x4xf32>,
    %c0_17 = arith.constant 0 : index
    %c0_18 = arith.constant 0 : index
    %30 = vector.load %arg7[%c0_17, %c0_18] : memref<4x1xf32, #tpu.memory_space<vmem>>, vector<4x1xf32>
    %cst_19 = arith.constant dense<0.000000e+00> : vector<4xf32>
    %31 = vector.multi_reduction <add>, %11, %cst_19 [1] : vector<4x256xf32> to vector<4xf32>
    %32 = vector.shape_cast %31 : vector<4xf32> to vector<4x1xf32>
    %33 = arith.addf %30, %32 : vector<4x1xf32>
    %c0_20 = arith.constant 0 : index
    %c0_21 = arith.constant 0 : index
    %34 = vector.load %arg7[%c0_20, %c0_21] : memref<4x1xf32, #tpu.memory_space<vmem>>, vector<4x1xf32>
    tpu.vector_store %arg7[%c0_20, %c0_21], %33 {strides = array<i32>} : memref<4x1xf32, #tpu.memory_space<vmem>>, vector<4x1xf32>,
    %c0_i32_22 = arith.constant 0 : i32
    %35 = arith.cmpi eq, %arg2, %c0_i32_22 : i32
    %36 = arith.extui %35 : i1 to i32
    %c0_i32_23 = arith.constant 0 : i32
    %37 = arith.cmpi ne, %36, %c0_i32_23 : i32
    scf.if %37 {
      %c0_24 = arith.constant 0 : index
      %c0_25 = arith.constant 0 : index
      %38 = vector.load %arg7[%c0_24, %c0_25] : memref<4x1xf32, #tpu.memory_space<vmem>>, vector<4x1xf32>
      %cst_26 = arith.constant 9.99999993E-9 : f32
      %39 = vector.broadcast %cst_26 : f32 to vector<4x1xf32>
      %40 = arith.addf %38, %39 : vector<4x1xf32>
      %41 = tpu.reciprocal %40 : vector<4x1xf32> -> vector<4x1xf32>
      %cst_27 = arith.constant 5.000000e-01 : f32
      %42 = vector.broadcast %cst_27 : f32 to vector<4x1xf32>
      %43 = arith.mulf %41, %42 : vector<4x1xf32>
      %c0_28 = arith.constant 0 : index
      %c0_29 = arith.constant 0 : index
      %c0_30 = arith.constant 0 : index
      %44 = vector.load %arg5[%c0_28, %c0_29, %c0_30] : memref<1x4x4xf32, #tpu.memory_space<vmem>>, vector<1x4x4xf32>
      %45 = vector.shape_cast %44 : vector<1x4x4xf32> to vector<4x4xf32>
      %c0_31 = arith.constant 0 : index
      %c0_32 = arith.constant 0 : index
      %46 = vector.load %arg6[%c0_31, %c0_32] : memref<4x4xf32, #tpu.memory_space<vmem>>, vector<4x4xf32>
      %47 = vector.broadcast %43 : vector<4x1xf32> to vector<4x4xf32>
      %48 = arith.mulf %46, %47 : vector<4x4xf32>
      %49 = arith.addf %45, %48 : vector<4x4xf32>
      %c0_33 = arith.constant 0 : index
      %c0_34 = arith.constant 0 : index
      %c0_35 = arith.constant 0 : index
      %50 = vector.load %arg5[%c0_33, %c0_34, %c0_35] : memref<1x4x4xf32, #tpu.memory_space<vmem>>, vector<1x4x4xf32>
      %51 = vector.shape_cast %50 : vector<1x4x4xf32> to vector<4x4xf32>
      %52 = vector.shape_cast %49 : vector<4x4xf32> to vector<1x4x4xf32>
      tpu.vector_store %arg5[%c0_33, %c0_34, %c0_35], %52 {strides = array<i32>} : memref<1x4x4xf32, #tpu.memory_space<vmem>>, vector<1x4x4xf32>,
    } else {
    }
    return
  }
  func.func @transform_0(%arg0: i32, %arg1: i32, %arg2: i32) -> (i32, i32, i32) {
    %c1_i32 = arith.constant 1 : i32
    %0 = arith.muli %arg0, %c1_i32 : i32
    %1 = arith.addi %0, %arg1 : i32
    %c0_i32 = arith.constant 0 : i32
    %c0_i32_0 = arith.constant 0 : i32
    return %1, %c0_i32, %arg2 : i32, i32, i32
  }
  func.func @transform_1(%arg0: i32, %arg1: i32, %arg2: i32) -> (i32, i32, i32) {
    %c1_i32 = arith.constant 1 : i32
    %0 = arith.muli %arg0, %c1_i32 : i32
    %1 = arith.addi %0, %arg1 : i32
    %c0_i32 = arith.constant 0 : i32
    %c0_i32_0 = arith.constant 0 : i32
    return %1, %c0_i32, %arg2 : i32, i32, i32
  }
  func.func @transform_2(%arg0: i32, %arg1: i32, %arg2: i32) -> (i32, i32, i32) {
    %c0_i32 = arith.constant 0 : i32
    %c0_i32_0 = arith.constant 0 : i32
    %c0_i32_1 = arith.constant 0 : i32
    return %arg0, %c0_i32, %c0_i32_0 : i32, i32, i32
  }
}

</mosaic_0001>

<llo_original>
// kernel: tpu_custom_call.1
$region0: #{tpu_custom_call.1}
  #allocation0 [shape = 'u32[]', space=smem, size = 0x4, offset = 0x4, fixed_abs, tag = 'smem constant byte address 0x4 - core index']
  #allocation1 [shape = 'u32[144,128]{1,0:T(1,128)}', space=vmem, size = 0x12000, scoped, tag = 'internal scratch']
  #allocation2 [shape = 'f32[4,4]{1,0:T(4,128)}', space=vmem, size = 0x800, scoped, tag = 'scratch operand']
  #allocation3 [shape = 'f32[4,1]{1,0:T(4,128)}', space=vmem, size = 0x800, scoped, tag = 'scratch operand']
  %s0 = inlined_call_operand.hbm [shape: f32[2,4,256], index: 0, kind: input, shape index: {}]
  %s1 = inlined_call_operand.hbm [shape: f32[2,4,256], index: 1, kind: input, shape index: {}]
  %s2 = inlined_call_operand.hbm [shape: f32[2,4,4], index: 2, kind: output, shape index: {}]
  %s3 = sld [smem:[#allocation0]]
  $region61: #{tpu_custom_call.1} parent=0
    _
  %s5 = ssub.s32 1, %s3
  %s6 = scalar_select 0, %s5, %s3
  $region1: #{tpu_custom_call.1} parent=0
    #allocation4 [shape = 'u8[8192]{0}', space=vmem, size = 0x2000, scoped, tag = 'input window, operand 0']
    #allocation5 [shape = 's32[2]{0}', space=sflag, size = 0x8, scoped, tag = 'scoped memory for tpu_custom_call.1']
    #allocation6 [shape = 's32[2]{0}', space=sflag, size = 0x8, scoped, tag = 'scoped memory for tpu_custom_call.1']
    #allocation7 [shape = 'u8[8192]{0}', space=vmem, size = 0x2000, scoped, tag = 'input window, operand 1']
    #allocation8 [shape = 's32[2]{0}', space=sflag, size = 0x8, scoped, tag = 'scoped memory for tpu_custom_call.1']
    #allocation9 [shape = 'u8[4096]{0}', space=vmem, size = 0x1000, scoped, tag = 'output window, operand 0']
    %7 = vsyncpa [#allocation5], 0
    %s8 = scalar_lea.sflag [#allocation5], 1
    %9 = vsyncpa %s8, 0
    %10 = vsyncpa [#allocation8], 0
    %s11 = scalar_lea.sflag [#allocation8], 1
    %12 = vsyncpa %s11, 0
    %13 = vsyncpa [#allocation6], 0
    %s14 = scalar_lea.sflag [#allocation6], 1
    %15 = vsyncpa %s14, 0
    loop: start=0, step=1, limit=4
    $region2: #{tpu_custom_call.1} parent=1 // loop_pre_header
      _
    $region3: #{tpu_custom_call.1} parent=1 // loop_header
      %s17 = sphi 0, %s21
      %p18 = scmp.ge.s32.totalorder %s17, 4
      %s24 = sphi 0, %s43
      %s25 = sphi 0, %s39
      %s26 = sphi 0, %s35
      %s27 = sphi 0, %s24
      %s28 = sphi 0, %s25
      %s29 = sphi 0, %s26
      %s30 = sphi 0, %s27
      %s31 = sphi 0, %s28
      %s32 = sphi 0, %s29
      %s50 = sphi 0, %s52
      %s53 = sphi 0, %s50
      %s54 = sphi 0, %s53
      %s70 = sphi 0, %s54
      %s80 = sphi 0, %s82
      %s83 = sphi 0, %s80
      %s84 = sphi 0, %s83
      %s100 = sphi 0, %s84
      %s106 = sphi 0, %s108
      %s109 = sphi 0, %s106
      %s110 = sphi 0, %s109
      %s126 = sphi 0, %s110
    $region4: #{tpu_custom_call.1} parent=1 // loop_header_branch
      %20 = sbr.rel (%p18) target = $region8
    $region5: #{tpu_custom_call.1} parent=1 // loop_body
      %s22 = ssub.s32 %s17, 1
      %s23 = ssub.s32 %s17, 2
      %s33 = sadd.s32 1, %s26
      %p34 = scmp.ge.s32.totalorder %s33, 1
      %s35 = scalar_select %p34, 0, %s33
      %s36 = sadd.s32 1, %s25
      %s37 = scalar_select %p34, %s36, %s25
      %p38 = scmp.ge.s32.totalorder %s37, 1
      %s39 = scalar_select %p38, 0, %s37
      %s40 = sadd.s32 1, %s24
      %s41 = scalar_select %p38, %s40, %s24
      %p42 = scmp.ge.s32.totalorder %s41, 2
      %s43 = scalar_select %p42, 0, %s41
      %s44 = sadd.s32 %s24, %s25
      %s45 = sadd.s32 %s43, %s39
      %s46 = ssub.s32 %s44, %s45
      %s47 = ssub.s32 %s26, %s35
      %s48 = sor.u32 %s46, %s47
      %p49 = scmp.eq.s32.totalorder %s48, 0
      %s51 = sadd.s32 %s50, 1
      %s52 = scalar_select %p49, %s50, %s51
      %p55 = pneg %p49
      %p56 = scmp.eq.s32.totalorder %s17, 1
      %p57 = por %p55, %p56
      %p58 = scmp.ne.s32.totalorder %s50, %s53
      %p59 = scmp.eq.s32.totalorder %s17, 0
      %p60 = por %p58, %p59
      %p61 = scmp.ne.s32.totalorder %s50, %s53
      %p62 = scmp.eq.s32.totalorder %s22, 1
      %p63 = por %p61, %p62
      %p64 = scmp.ne.s32.totalorder %s53, %s54
      %p65 = scmp.eq.s32.totalorder %s22, 0
      %p66 = por %p64, %p65
      %p67 = scmp.ne.s32.totalorder %s53, %s54
      %p68 = scmp.eq.s32.totalorder %s23, 1
      %p69 = por %p67, %p68
      %p71 = scmp.ne.s32.totalorder %s54, %s70
      %p72 = scmp.eq.s32.totalorder %s23, 0
      %p73 = por %p71, %p72
      %s74 = sadd.s32 %s24, %s25
      %s75 = sadd.s32 %s43, %s39
      %s76 = ssub.s32 %s74, %s75
      %s77 = ssub.s32 %s26, %s35
      %s78 = sor.u32 %s76, %s77
      %p79 = scmp.eq.s32.totalorder %s78, 0
      %s81 = sadd.s32 %s80, 1
      %s82 = scalar_select %p79, %s80, %s81
      %p85 = pneg %p79
      %p86 = scmp.eq.s32.totalorder %s17, 1
      %p87 = por %p85, %p86
      %p88 = scmp.ne.s32.totalorder %s80, %s83
      %p89 = scmp.eq.s32.totalorder %s17, 0
      %p90 = por %p88, %p89
      %p91 = scmp.ne.s32.totalorder %s80, %s83
      %p92 = scmp.eq.s32.totalorder %s22, 1
      %p93 = por %p91, %p92
      %p94 = scmp.ne.s32.totalorder %s83, %s84
      %p95 = scmp.eq.s32.totalorder %s22, 0
      %p96 = por %p94, %p95
      %p97 = scmp.ne.s32.totalorder %s83, %s84
      %p98 = scmp.eq.s32.totalorder %s23, 1
      %p99 = por %p97, %p98
      %p101 = scmp.ne.s32.totalorder %s84, %s100
      %p102 = scmp.eq.s32.totalorder %s23, 0
      %p103 = por %p101, %p102
      %s104 = ssub.s32 %s24, %s43
      %p105 = scmp.eq.s32.totalorder %s104, 0
      %s107 = sadd.s32 %s106, 1
      %s108 = scalar_select %p105, %s106, %s107
      %p111 = pneg %p105
      %p112 = scmp.eq.s32.totalorder %s17, 1
      %p113 = por %p111, %p112
      %p114 = scmp.ne.s32.totalorder %s106, %s109
      %p115 = scmp.eq.s32.totalorder %s17, 0
      %p116 = por %p114, %p115
      %p117 = scmp.ne.s32.totalorder %s106, %s109
      %p118 = scmp.eq.s32.totalorder %s22, 1
      %p119 = por %p117, %p118
      %p120 = scmp.ne.s32.totalorder %s109, %s110
      %p121 = scmp.eq.s32.totalorder %s22, 0
      %p122 = por %p120, %p121
      %p123 = scmp.ne.s32.totalorder %s109, %s110
      %p124 = scmp.eq.s32.totalorder %s23, 1
      %p125 = por %p123, %p124
      %p127 = scmp.ne.s32.totalorder %s110, %s126
      %p128 = scmp.eq.s32.totalorder %s23, 0
      %p129 = por %p127, %p128
      %p130 = scmp.le.s32.totalorder 1, %s17
      %p131 = scmp.lt.s32.totalorder %s17, 3
      %p132 = pnand %p130, %p131
      %p133 = pneg %p132
      // Predicated region
      $region9: #{tpu_custom_call.1} parent=5 // pred_check
        _
      $region10: #{tpu_custom_call.1} parent=5 // pred_check_branch
        %135 = sbr.rel (%p132) target = $region12
      $region11: #{tpu_custom_call.1} parent=5 // pred_region
        %s136 = ssub.s32 %s17, 1
      $region12: #{tpu_custom_call.1} parent=5 // pred_fallthru
        _
      %p137 = scmp.lt.s32.totalorder %s17, 2
      // Predicated region
      $region13: #{tpu_custom_call.1} parent=5 // pred_check
        %p138 = pneg %p137
      $region14: #{tpu_custom_call.1} parent=5 // pred_check_branch
        %140 = sbr.rel (%p138) target = $region16
      $region15: #{tpu_custom_call.1} parent=5 // pred_region
        // Predicated region
        $region17: #{tpu_custom_call.1} parent=15 // pred_check
          %p141 = pneg %p60
        $region18: #{tpu_custom_call.1} parent=15 // pred_check_branch
          %143 = sbr.rel (%p141) target = $region20
        $region19: #{tpu_custom_call.1} parent=15 // pred_region
          %s144 = sand.u32 %s50, 1
          %s145 = scalar_lea.sflag [#allocation5], %s144
          %s146 = sand.u32 %s50, 1
          %s147 = smul.addr %s146, 8
          %s148 = scalar_lea.vmem [#allocation4], %s147
          %s149 = sadd.s32 %s24, %s25
          %s150 = smul.u32 2, %s26
          %s152 = ssub.s32 128, 128
          %153 = vsyncadd %s145, %s152
          %s154 = smul.addr %s149, 2
          %s155 = sadd.s32 %s150, %s154
          %s156 = smul.addr %s155, 64
          %s157 = scalar_lea.hbm %s0, %s156
          %s159 = sshll.u32 %s148, 4
          %s160 = int_to_ptr.vmem [resolvable:$true] %s159
          %162 = dma.hbm_to_vmem [thread:$0]  %s157, 128, %s160, %s145
        $region20: #{tpu_custom_call.1} parent=15 // pred_fallthru
          _
        // Predicated region
        $region21: #{tpu_custom_call.1} parent=15 // pred_check
          %p163 = pneg %p90
        $region22: #{tpu_custom_call.1} parent=15 // pred_check_branch
          %165 = sbr.rel (%p163) target = $region24
        $region23: #{tpu_custom_call.1} parent=15 // pred_region
          %s166 = sand.u32 %s80, 1
          %s167 = scalar_lea.sflag [#allocation8], %s166
          %s168 = sand.u32 %s80, 1
          %s169 = smul.addr %s168, 8
          %s170 = scalar_lea.vmem [#allocation7], %s169
          %s171 = sadd.s32 %s24, %s25
          %s172 = smul.u32 2, %s26
          %s174 = ssub.s32 128, 128
          %175 = vsyncadd %s167, %s174
          %s176 = smul.addr %s171, 2
          %s177 = sadd.s32 %s172, %s176
          %s178 = smul.addr %s177, 64
          %s179 = scalar_lea.hbm %s1, %s178
          %s181 = sshll.u32 %s170, 4
          %s182 = int_to_ptr.vmem [resolvable:$true] %s181
          %184 = dma.hbm_to_vmem [thread:$0]  %s179, 128, %s182, %s167
        $region24: #{tpu_custom_call.1} parent=15 // pred_fallthru
          _
      $region16: #{tpu_custom_call.1} parent=5 // pred_fallthru
        _
      %p185 = scmp.le.s32.totalorder 1, %s17
      %p186 = scmp.lt.s32.totalorder %s17, 3
      %p187 = pnand %p185, %p186
      %p188 = pneg %p187
      // Predicated region
      $region25: #{tpu_custom_call.1} parent=5 // pred_check
        _
      $region26: #{tpu_custom_call.1} parent=5 // pred_check_branch
        %190 = sbr.rel (%p187) target = $region28
      $region27: #{tpu_custom_call.1} parent=5 // pred_region
        %s191 = ssub.s32 %s17, 1
        %s192 = sand.u32 %s53, 1
        %s193 = scalar_lea.sflag [#allocation5], %s192
        %s194 = sand.u32 %s53, 1
        %s195 = smul.addr %s194, 8
        %s196 = scalar_lea.vmem [#allocation4], %s195
        // Predicated region
        $region29: #{tpu_custom_call.1} parent=27 // pred_check
          %p197 = pneg %p66
        $region30: #{tpu_custom_call.1} parent=27 // pred_check_branch
          %199 = sbr.rel (%p197) target = $region32
        $region31: #{tpu_custom_call.1} parent=27 // pred_region
          %200 = dma.done %s193, 128
        $region32: #{tpu_custom_call.1} parent=27 // pred_fallthru
          _
        %s201 = sand.u32 %s83, 1
        %s202 = scalar_lea.sflag [#allocation8], %s201
        %s203 = sand.u32 %s83, 1
        %s204 = smul.addr %s203, 8
        %s205 = scalar_lea.vmem [#allocation7], %s204
        // Predicated region
        $region33: #{tpu_custom_call.1} parent=27 // pred_check
          %p206 = pneg %p96
        $region34: #{tpu_custom_call.1} parent=27 // pred_check_branch
          %208 = sbr.rel (%p206) target = $region36
        $region35: #{tpu_custom_call.1} parent=27 // pred_region
          %209 = dma.done %s202, 128
        $region36: #{tpu_custom_call.1} parent=27 // pred_fallthru
          _
        %s210 = sand.u32 %s53, 1
        %s211 = scalar_lea.sflag [#allocation5], %s210
        %s212 = sand.u32 %s53, 1
        %s213 = smul.addr %s212, 8
        %s214 = scalar_lea.vmem [#allocation4], %s213
        %p215 = pneg %p66
        %p216 = pneg %p63
        %s217 = sand.u32 %s83, 1
        %s218 = scalar_lea.sflag [#allocation8], %s217
        %s219 = sand.u32 %s83, 1
        %s220 = smul.addr %s219, 8
        %s221 = scalar_lea.vmem [#allocation7], %s220
        %p222 = pneg %p96
        %p223 = pneg %p93
        %p224 = pneg %p122
        %p225 = pneg %p119
        %s226 = sand.u32 %s109, 1
        %s227 = scalar_lea.sflag [#allocation6], %s226
        %s228 = sand.u32 %s109, 1
        %s229 = smul.addr %s228, 4
        %s230 = scalar_lea.vmem [#allocation9], %s229
        %s231 = sadd.s32 %s27, %s28
        %s232 = smul.u32 2, %s29
        %s233 = sadd.s32 %s27, %s28
        %s234 = smul.u32 2, %s29
        %p235 = scmp.eq.s32.totalorder %s28, 0
        %p236 = scmp.eq.s32.totalorder %s29, 0
        %p237 = pnand %p235, %p236
        %p238 = pneg %p237
        // Predicated region
        $region37: #{tpu_custom_call.1} parent=27 // pred_check
          _
        $region38: #{tpu_custom_call.1} parent=27 // pred_check_branch
          %240 = sbr.rel (%p237) target = $region40
        $region39: #{tpu_custom_call.1} parent=27 // pred_region
          %vm241 = vcmask 27648
          %242 = vst.msk [vmem:[%s230] sm:$0xf] %vm241, 0.0
        $region40: #{tpu_custom_call.1} parent=27 // pred_fallthru
          _
        // Predicated region
        $region41: #{tpu_custom_call.1} parent=27 // pred_check
          %p243 = pneg %p236
        $region42: #{tpu_custom_call.1} parent=27 // pred_check_branch
          %245 = sbr.rel (%p243) target = $region44
        $region43: #{tpu_custom_call.1} parent=27 // pred_region
          %vm246 = vcmask 27648
          %247 = vst.msk [vmem:[#allocation2] sm:$0xf] %vm246, 0.0
          %vm248 = vcmask 3072
          %249 = vst.msk [vmem:[#allocation3] sm:$0xf] %vm248, 0.0
        $region44: #{tpu_custom_call.1} parent=27 // pred_fallthru
          _
        %v250 = vld [vmem:[%s196] sm:$0xff]
        %v251 = vld [vmem:[%s205] sm:$0xff]
        %v252 = vlaneseq
        %v253 = vshrl.u32 %v252, 7
        %v255 = vcombine.high %v250, %v250
        %vm257 = vcmask 1043456
        %v258 = vsel %vm257, %v250, -inf
        %v259 = vrot.slane %v258, 4
        %v260 = vmax.f32 %v258, %v259
        %v261 = vrot.slane %v260, 2
        %v262 = vmax.f32 %v260, %v261
        %v263 = vrot.slane %v262, 1
        %v264 = vmax.f32 %v262, %v263
        %v265 = vsel %vm257, %v255, -inf
        %v266 = vrot.slane %v265, 4
        %v267 = vmax.f32 %v265, %v266
        %v268 = vrot.slane %v267, 2
        %v269 = vmax.f32 %v267, %v268
        %v270 = vrot.slane %v269, 1
        %v271 = vmax.f32 %v269, %v270
        %v274 = vcombine.low %v264, %v271
        %vm276 = vcmp.eq.f32.partialorder %v250, %v274
        %v278 = vunpack.c.l.s4 839922192
        %v279 = vunpack.c.0.s8 %v278
        %v280 = vlaneseq
        %v281 = vshrl.u32 %v280, 7
        %v282 = vsub.s32 %v279, %v281
        %v283 = vrot.slane %v253, %v282
        %v284 = vsel %vm276, %v283, 4
        %v285 = vcombine.high %v284, %v284
        %v286 = vsel %vm257, %v284, 2147483647
        %v287 = vrot.slane %v286, 4
        %vm288 = vcmp.lt.s32.totalorder %v286, %v287
        %v289 = vsel %vm288, %v286, %v287
        %v290 = vrot.slane %v289, 2
        %vm291 = vcmp.lt.s32.totalorder %v289, %v290
        %v292 = vsel %vm291, %v289, %v290
        %v293 = vrot.slane %v292, 1
        %vm294 = vcmp.lt.s32.totalorder %v292, %v293
        %v295 = vsel %vm294, %v292, %v293
        %v296 = vsel %vm257, %v285, 2147483647
        %v297 = vrot.slane %v296, 4
        %vm298 = vcmp.lt.s32.totalorder %v296, %v297
        %v299 = vsel %vm298, %v296, %v297
        %v300 = vrot.slane %v299, 2
        %vm301 = vcmp.lt.s32.totalorder %v299, %v300
        %v302 = vsel %vm301, %v299, %v300
        %v303 = vrot.slane %v302, 1
        %vm304 = vcmp.lt.s32.totalorder %v302, %v303
        %v305 = vsel %vm304, %v302, %v303
        %vm306 = vcmp.eq.s32.totalorder %v253, %v295
        %vm307 = vcmp.eq.s32.totalorder %v253, %v305
        %v308 = vsel %vm306, 1.0, 0.0
        %v309 = vsel %vm307, 1.0, 0.0
        %v310 = vld [vmem:[#allocation2] sm:$0xf]
        %v312 = vcombine.high %v251, %v251
        %314 = vmatprep.subr.mxu0 %v309
        %315 = vmatpush1.xpose.msra.mxu0 %v308
        %316 = vmatprep.subr.mxu0 0.0
        %317 = vmatpush1.xpose.msra.mxu0 0.0
        %318 = vmatprep.subr.mxu0 0.0
        %319 = vmatpush1.xpose.msra.mxu0 0.0
        %320 = vmatprep.subr.mxu0 0.0
        %321 = vmatpush1.xpose.msra.mxu0 0.0
        %322 = vmatprep.subr.mxu0 0.0
        %323 = vmatpush1.xpose.msra.mxu0 0.0
        %324 = vmatprep.subr.mxu0 0.0
        %325 = vmatpush1.xpose.msra.mxu0 0.0
        %326 = vmatprep.subr.mxu0 0.0
        %327 = vmatpush1.xpose.msra.mxu0 0.0
        %328 = vmatprep.subr.mxu0 0.0
        %329 = vmatpush1.xpose.msra.mxu0 0.0
        %330 = vmatprep.subr.mxu0 0.0
        %331 = vmatpush1.xpose.msra.mxu0 0.0
        %332 = vmatprep.subr.mxu0 0.0
        %333 = vmatpush1.xpose.msra.mxu0 0.0
        %334 = vmatprep.subr.mxu0 0.0
        %335 = vmatpush1.xpose.msra.mxu0 0.0
        %336 = vmatprep.subr.mxu0 0.0
        %337 = vmatpush1.xpose.msra.mxu0 0.0
        %338 = vmatprep.subr.mxu0 0.0
        %339 = vmatpush1.xpose.msra.mxu0 0.0
        %340 = vmatprep.subr.mxu0 0.0
        %341 = vmatpush1.xpose.msra.mxu0 0.0
        %342 = vmatprep.subr.mxu0 0.0
        %343 = vmatpush1.xpose.msra.mxu0 0.0
        %344 = vmatprep.subr.mxu0 0.0
        %345 = vmatpush1.xpose.msra.mxu0 0.0
        %346 = vmatprep.subr.mxu0 0.0
        %347 = vmatpush1.xpose.msra.mxu0 0.0
        %348 = vmatprep.subr.mxu0 0.0
        %349 = vmatpush1.xpose.msra.mxu0 0.0
        %350 = vmatprep.subr.mxu0 0.0
        %351 = vmatpush1.xpose.msra.mxu0 0.0
        %352 = vmatprep.subr.mxu0 0.0
        %353 = vmatpush1.xpose.msra.mxu0 0.0
        %354 = vmatprep.subr.mxu0 0.0
        %355 = vmatpush1.xpose.msra.mxu0 0.0
        %356 = vmatprep.subr.mxu0 0.0
        %357 = vmatpush1.xpose.msra.mxu0 0.0
        %358 = vmatprep.subr.mxu0 0.0
        %359 = vmatpush1.xpose.msra.mxu0 0.0
        %360 = vmatprep.subr.mxu0 0.0
        %361 = vmatpush1.xpose.msra.mxu0 0.0
        %362 = vmatprep.subr.mxu0 0.0
        %363 = vmatpush1.xpose.msra.mxu0 0.0
        %364 = vmatprep.subr.mxu0 0.0
        %365 = vmatpush1.xpose.msra.mxu0 0.0
        %366 = vmatprep.subr.mxu0 0.0
        %367 = vmatpush1.xpose.msra.mxu0 0.0
        %368 = vmatprep.subr.mxu0 0.0
        %369 = vmatpush1.xpose.msra.mxu0 0.0
        %370 = vmatprep.subr.mxu0 0.0
        %371 = vmatpush1.xpose.msra.mxu0 0.0
        %372 = vmatprep.subr.mxu0 0.0
        %373 = vmatpush1.xpose.msra.mxu0 0.0
        %374 = vmatprep.subr.mxu0 0.0
        %375 = vmatpush1.xpose.msra.mxu0 0.0
        %376 = vmatprep.subr.mxu0 0.0
        %377 = vmatpush1.xpose.msra.mxu0 0.0
        %378 = vmatprep.mubr.f32.mxu0 %v312
        %379 = vmatmul.mubr.f32.gmra.mrb[0].mxu0 %v251
        %v380 = vpop.f32.mrb[0].mxu0
        %v381 = vadd.f32 0.0, %v380
        %v382 = vpop.f32.mrb[0].mxu0
        %383 = vdwg.mxu0
        %v384 = vadd.f32 %v310, %v381
        %vm385 = vcmask 27648
        %386 = vst.msk [vmem:[#allocation2] sm:$0xf] %vm385, %v384
        %v387 = vld [vmem:[#allocation3] sm:$0xf]
        %v388 = vsel %vm257, %v251, 0.0
        %v389 = vsel %vm257, %v312, 0.0
        %v390 = vadd.f32 %v388, %v389
        %391 = vadd.xlane.f32.xlu0 %v390
        %v392 = vpop.xlane.xlu0 %391
        %v393 = vadd.f32 %v387, %v392
        %vm394 = vcmask 3072
        %395 = vst.msk [vmem:[#allocation3] sm:$0xf] %vm394, %v393
        // Predicated region
        $region45: #{tpu_custom_call.1} parent=27 // pred_check
          %p396 = pneg %p236
        $region46: #{tpu_custom_call.1} parent=27 // pred_check_branch
          %398 = sbr.rel (%p396) target = $region48
        $region47: #{tpu_custom_call.1} parent=27 // pred_region
          %v399 = vld [vmem:[#allocation3] sm:$0xf]
          %v400 = vadd.f32 %v399, 1e-08
          %v401 = vrcp.pop %v400
          %v402 = vmul.f32 %v401, 0.5
          %v403 = vld [vmem:[%s230] sm:$0xf]
          %v404 = vld [vmem:[#allocation2] sm:$0xf]
          %406 = vset.pattern.permute.xlu0 0
          %407 = vperm.xlu0 %406, %v402
          %v408 = vpop.permute.xlu0 %407
          %v410 = vmul.f32 %v404, %v408
          %v411 = vadd.f32 %v403, %v410
          %412 = vst.msk [vmem:[%s230] sm:$0xf] %vm385, %v411
        $region48: #{tpu_custom_call.1} parent=27 // pred_fallthru
          _
        %s413 = sand.u32 %s109, 1
        %s414 = scalar_lea.sflag [#allocation6], %s413
        %s415 = sand.u32 %s109, 1
        %s416 = smul.addr %s415, 4
        %s417 = scalar_lea.vmem [#allocation9], %s416
        // Predicated region
        $region49: #{tpu_custom_call.1} parent=27 // pred_check
          %p418 = pneg %p119
        $region50: #{tpu_custom_call.1} parent=27 // pred_check_branch
          %420 = sbr.rel (%p418) target = $region52
        $region51: #{tpu_custom_call.1} parent=27 // pred_region
          %s422 = ssub.s32 64, 64
          %423 = vsyncadd %s414, %s422
          %s424 = smul.addr %s27, 64
          %s425 = scalar_lea.hbm %s2, %s424
          %s427 = sshll.u32 %s417, 4
          %s428 = int_to_ptr.vmem [resolvable:$true] %s427
          %430 = dma.vmem_to_hbm [thread:$0]  %s428, 64, %s425, %s414
        $region52: #{tpu_custom_call.1} parent=27 // pred_fallthru
          _
      $region28: #{tpu_custom_call.1} parent=5 // pred_fallthru
        _
      %p431 = scmp.le.s32.totalorder 2, %s17
      // Predicated region
      $region53: #{tpu_custom_call.1} parent=5 // pred_check
        %p432 = pneg %p431
      $region54: #{tpu_custom_call.1} parent=5 // pred_check_branch
        %434 = sbr.rel (%p432) target = $region56
      $region55: #{tpu_custom_call.1} parent=5 // pred_region
        %s435 = ssub.s32 %s17, 2
        // Predicated region
        $region57: #{tpu_custom_call.1} parent=55 // pred_check
          %p436 = pneg %p125
        $region58: #{tpu_custom_call.1} parent=55 // pred_check_branch
          %438 = sbr.rel (%p436) target = $region60
        $region59: #{tpu_custom_call.1} parent=55 // pred_region
          %s439 = sand.u32 %s110, 1
          %s440 = scalar_lea.sflag [#allocation6], %s439
          %s441 = sand.u32 %s110, 1
          %s442 = smul.addr %s441, 4
          %s443 = scalar_lea.vmem [#allocation9], %s442
          %444 = dma.done %s440, 64
        $region60: #{tpu_custom_call.1} parent=55 // pred_fallthru
          _
      $region56: #{tpu_custom_call.1} parent=5 // pred_fallthru
        _
    $region6: #{tpu_custom_call.1} parent=1 // loop_footer
      %s21 = sadd.s32 1, %s17
    $region7: #{tpu_custom_call.1} parent=1 // loop_footer_branch
      %16 = sbr.rel target = $region3
    $region8: #{tpu_custom_call.1} parent=1 // loop_exit
      _
    %445 = vsyncpa [#allocation5], 1
    %s446 = scalar_lea.sflag [#allocation5], 1
    %447 = vsyncpa %s446, 1
    %448 = vsyncpa [#allocation8], 1
    %s449 = scalar_lea.sflag [#allocation8], 1
    %450 = vsyncpa %s449, 1
    %451 = vsyncpa [#allocation6], 1
    %s452 = scalar_lea.sflag [#allocation6], 1
    %453 = vsyncpa %s452, 1

</llo_original>
